<compile_context>
chip_gen: v7x
topology: tpu7x:2x2x1
jax: 0.10.0
libtpu: 0.0.40
codegen_flags: <defaults>
</compile_context>

<pallas_src>
import jax
import jax.numpy as jnp
from jax.experimental import pallas as pl
from jax.experimental.pallas import tpu as pltpu


def _round_up(x, m):
    return ((x + m - 1) // m) * m


def _is_v5e():
    """Best-effort detection of TPU v5e (128x128 MXUs). Defaults to False."""
    try:
        kind = jax.devices()[0].device_kind.lower()
        return ("v5e" in kind) or ("v5 lite" in kind) or ("v5litepod" in kind)
    except Exception:
        return False


def _make_kernel(split_w2: bool):
    """Build the coupling-layer kernel.

    split_w2=False : layer 2 is one fused block-diagonal (2H,2D) GEMM
                     (fills the 256x256 MXU on v6e/v7x).
    split_w2=True  : layer 2 is two (H,D) GEMMs on the h halves
                     (avoids the zero half on v5e's 128x128 MXUs).
    """
    if split_w2:
        def kernel(z_ref, w1m_ref, b1_ref, w2t_ref, w2s_ref, b2t_ref, b2s_ref,
                   out_ref, logdet_ref):
            H = w2t_ref.shape[0]
            z = z_ref[...]                                        # (TB, D) f32
            # Layer 1 (mask already folded into w1m): bf16 MXU, f32 accumulate.
            h = jnp.tanh(
                jnp.dot(z.astype(jnp.bfloat16), w1m_ref[...],
                        preferred_element_type=jnp.float32)
                + b1_ref[...])                                    # (TB, 2H) f32
            hb = h.astype(jnp.bfloat16)
            # Layer 2, split per-net (inv_mask folded into w2*/b2*).
            t = (jnp.dot(hb[:, :H], w2t_ref[...],
                         preferred_element_type=jnp.float32) + b2t_ref[...])
            s = (jnp.dot(hb[:, H:], w2s_ref[...],
                         preferred_element_type=jnp.float32) + b2s_ref[...])
            # out = mask*z + (1-mask)*(z*exp(s)+t)  ==  z*exp(s') + t'
            out_ref[...] = z * jnp.exp(s) + t
            logdet_ref[...] = jnp.sum(s, axis=-1, keepdims=True)
        return kernel

    def kernel(z_ref, w1m_ref, b1_ref, w2_ref, b2_ref, out_ref, logdet_ref):
        D = out_ref.shape[-1]
        z = z_ref[...]                                            # (TB, D) f32
        h = jnp.tanh(
            jnp.dot(z.astype(jnp.bfloat16), w1m_ref[...],
                    preferred_element_type=jnp.float32)
            + b1_ref[...])                                        # (TB, 2H) f32
        ts = (jnp.dot(h.astype(jnp.bfloat16), w2_ref[...],
                      preferred_element_type=jnp.float32)
              + b2_ref[...])                                      # (TB, 2D) f32
        t = ts[:, :D]
        s = ts[:, D:]
        out_ref[...] = z * jnp.exp(s) + t
        logdet_ref[...] = jnp.sum(s, axis=-1, keepdims=True)
    return kernel


def fuse_params(params, mask, *, split_w2=False, weight_dtype=jnp.bfloat16):
    """One-time precompute: fuse net_t/net_s, fold the coupling mask.

    NOTE: folding inv_mask into layer-2 weights/biases requires a *binary*
    {0,1} coupling mask (standard RealNVP).
    """
    D, H = params["w1_t"].shape
    mask2d = mask.reshape(1, D).astype(jnp.float32)
    inv = 1.0 - mask2d

    # Layer 1: side-by-side t/s nets; coupling mask folded into the rows:
    #   (z*mask) @ W1 == z @ (diag(mask) @ W1)
    W1 = jnp.concatenate([params["w1_t"], params["w1_s"]], axis=1)    # (D, 2H)
    b1 = jnp.concatenate([params["b1_t"], params["b1_s"]], axis=1)    # (1, 2H)
    w1m = (mask2d.T * W1).astype(weight_dtype)

    # Layer 2: inv_mask folded into the output columns:
    #   t' = (1-m)*t, s' = (1-m)*s  ->  out = z*exp(s') + t', logdet = sum(s')
    w2t = (params["w2_t"] * inv).astype(weight_dtype)                 # (H, D)
    w2s = (params["w2_s"] * inv).astype(weight_dtype)                 # (H, D)
    b2t = params["b2_t"] * inv                                        # (1, D)
    b2s = params["b2_s"] * inv                                        # (1, D)

    fused = {"w1m": w1m, "b1": b1, "split_w2": bool(split_w2)}
    if split_w2:
        fused.update(w2t=w2t, w2s=w2s, b2t=b2t, b2s=b2s)
    else:
        zeros = jnp.zeros((H, D), weight_dtype)
        fused["w2"] = jnp.concatenate(                                 # (2H, 2D)
            [jnp.concatenate([w2t, zeros], axis=1),
             jnp.concatenate([zeros, w2s], axis=1)], axis=0)
        fused["b2"] = jnp.concatenate([b2t, b2s], axis=1)              # (1, 2D)
    return fused


def realnvp_forward(z, fused, *, tb_max=2048):
    """z: (B, D) f32, fused: output of fuse_params. Returns (out, logdet)."""
    B, D = z.shape
    split = fused["split_w2"]

    # Batch tile: multiple of 8 sublanes, capped at tb_max; also cap at ~B/2
    # so the grid has >=2 parallel steps when the batch allows (v7x 2 TCs).
    TB = min(tb_max, _round_up(B, 8))
    if _round_up(B, 8) >= 16:
        TB = min(TB, _round_up(pl.cdiv(B, 2), 8))
    Bp = pl.cdiv(B, TB) * TB
    zp = z if Bp == B else jnp.pad(z, ((0, Bp - B), (0, 0)))

    resident = lambda shape: pl.BlockSpec(shape, lambda i: (0, 0))

    if split:
        weight_args = (fused["w1m"], fused["b1"],
                       fused["w2t"], fused["w2s"], fused["b2t"], fused["b2s"])
    else:
        weight_args = (fused["w1m"], fused["b1"], fused["w2"], fused["b2"])
    weight_specs = [resident(a.shape) for a in weight_args]

    out, logdet = pl.pallas_call(
        _make_kernel(split),
        out_shape=(
            jax.ShapeDtypeStruct((Bp, D), jnp.float32),
            jax.ShapeDtypeStruct((Bp, 1), jnp.float32),
        ),
        grid=(Bp // TB,),
        in_specs=[pl.BlockSpec((TB, D), lambda i: (i, 0))] + weight_specs,
        out_specs=(
            pl.BlockSpec((TB, D), lambda i: (i, 0)),
            pl.BlockSpec((TB, 1), lambda i: (i, 0)),
        ),
        compiler_params=pltpu.CompilerParams(
            dimension_semantics=("parallel",)),
    )(zp, *weight_args)

    return out[:B], logdet[:B, 0]


def init_params(key, D, H):
    ks = jax.random.split(key, 8)
    scale1 = 1.0 / jnp.sqrt(D)
    # Small last-layer init (near-identity flow), standard for RealNVP;
    # also keeps exp(s) well conditioned.
    scale2 = 0.1 / jnp.sqrt(H)
    return {
        "w1_t": jax.random.normal(ks[0], (D, H), jnp.float32) * scale1,
        "b1_t": jax.random.normal(ks[1], (1, H), jnp.float32) * 0.01,
        "w2_t": jax.random.normal(ks[2], (H, D), jnp.float32) * scale2,
        "b2_t": jax.random.normal(ks[3], (1, D), jnp.float32) * 0.01,
        "w1_s": jax.random.normal(ks[4], (D, H), jnp.float32) * scale1,
        "b1_s": jax.random.normal(ks[5], (1, H), jnp.float32) * 0.01,
        "w2_s": jax.random.normal(ks[6], (H, D), jnp.float32) * scale2,
        "b2_s": jax.random.normal(ks[7], (1, D), jnp.float32) * 0.01,
    }


def realnvp_forward_ref(z, mask, p):
    """Pure-JAX f32 reference mirroring the PyTorch forward (unfused nets)."""
    zm = z * mask
    t = jnp.tanh(zm @ p["w1_t"] + p["b1_t"]) @ p["w2_t"] + p["b2_t"]
    s = jnp.tanh(zm @ p["w1_s"] + p["b1_s"]) @ p["w2_s"] + p["b2_s"]
    out = mask * z + (1.0 - mask) * (z * jnp.exp(s) + t)
    logdet = jnp.sum((1.0 - mask) * s, -1)
    return out, logdet


if __name__ == "__main__":
    B, D, H = 256, 128, 128   # batch, feature dim, hidden dim

    key = jax.random.PRNGKey(0)
    k_z, k_p = jax.random.split(key)

    z = jax.random.normal(k_z, (B, D), jnp.float32)
    # alternating binary coupling mask over features
    mask = (jnp.arange(D) % 2).astype(jnp.float32)
    params = init_params(k_p, D, H)

    # One-time precompute; layer-2 form is generation-conditional (v5e split).
    fused = fuse_params(params, mask, split_w2=_is_v5e())

    out, logdet = realnvp_forward(z, fused)
    out = jax.block_until_ready(out)
    logdet = jax.block_until_ready(logdet)

    # Sanity check against the pure-JAX f32 (unfused) reference.
    # bf16 MXU inputs (f32 accumulation) -> looser tolerance than f32.
    out_ref, logdet_ref = realnvp_forward_ref(z, mask, params)
    assert out.shape == (B, D) and logdet.shape == (B,)
    assert jnp.allclose(out, out_ref, atol=5e-2, rtol=5e-2)
    assert jnp.allclose(logdet, logdet_ref, atol=5e-2, rtol=5e-2)

    print("KERNEL_OK")
</pallas_src>

<mosaic_0001>
module attributes {stable_mosaic.version = 11 : i64} {
  func.func @kernel(%arg0: i32, %arg1: memref<128x128xf32, #tpu.memory_space<vmem>>, %arg2: memref<128x256xbf16, #tpu.memory_space<vmem>>, %arg3: memref<1x256xf32, #tpu.memory_space<vmem>>, %arg4: memref<256x256xbf16, #tpu.memory_space<vmem>>, %arg5: memref<1x256xf32, #tpu.memory_space<vmem>>, %arg6: memref<128x128xf32, #tpu.memory_space<vmem>>, %arg7: memref<128x1xf32, #tpu.memory_space<vmem>>) attributes {dimension_semantics = [#tpu.dimension_semantics<parallel>], iteration_bounds = array<i64: 2>, scalar_prefetch = 0 : i64, scratch_operands = 0 : i64, tpu.core_type = #tpu.core_type<tc>, window_params = [{transform_indices = @transform_0, window_bounds = array<i64: 128, 128>}, {pipeline_mode = #tpu.pipeline_mode<synchronous>, transform_indices = @transform_1, window_bounds = array<i64: 128, 256>}, {pipeline_mode = #tpu.pipeline_mode<synchronous>, transform_indices = @transform_2, window_bounds = array<i64: 1, 256>}, {pipeline_mode = #tpu.pipeline_mode<synchronous>, transform_indices = @transform_3, window_bounds = array<i64: 256, 256>}, {pipeline_mode = #tpu.pipeline_mode<synchronous>, transform_indices = @transform_4, window_bounds = array<i64: 1, 256>}, {transform_indices = @transform_5, window_bounds = array<i64: 128, 128>}, {transform_indices = @transform_6, window_bounds = array<i64: 128, 1>}]} {
    %c0 = arith.constant 0 : index
    %c0_0 = arith.constant 0 : index
    %0 = vector.load %arg1[%c0, %c0_0] : memref<128x128xf32, #tpu.memory_space<vmem>>, vector<128x128xf32>
    %1 = arith.truncf %0 : vector<128x128xf32> to vector<128x128xbf16>
    %c0_1 = arith.constant 0 : index
    %c0_2 = arith.constant 0 : index
    %2 = vector.load %arg2[%c0_1, %c0_2] : memref<128x256xbf16, #tpu.memory_space<vmem>>, vector<128x256xbf16>
    %cst = arith.constant dense<0.000000e+00> : vector<128x256xf32>
    %3 = tpu.matmul %1, %2, %cst {dimension_numbers = #tpu.dot_dimension_numbers<[1], [0], [0], [1], [0, 0, 1, 1], [], []>} : vector<128x128xbf16>, vector<128x256xbf16>, vector<128x256xf32> -> vector<128x256xf32>
    %c0_3 = arith.constant 0 : index
    %c0_4 = arith.constant 0 : index
    %4 = vector.load %arg3[%c0_3, %c0_4] : memref<1x256xf32, #tpu.memory_space<vmem>>, vector<1x256xf32>
    %5 = vector.broadcast %4 : vector<1x256xf32> to vector<128x256xf32>
    %6 = arith.addf %3, %5 : vector<128x256xf32>
    %7 = math.tanh %6 : vector<128x256xf32>
    %8 = arith.truncf %7 : vector<128x256xf32> to vector<128x256xbf16>
    %c0_5 = arith.constant 0 : index
    %c0_6 = arith.constant 0 : index
    %9 = vector.load %arg4[%c0_5, %c0_6] : memref<256x256xbf16, #tpu.memory_space<vmem>>, vector<256x256xbf16>
    %cst_7 = arith.constant dense<0.000000e+00> : vector<128x256xf32>
    %10 = tpu.matmul %8, %9, %cst_7 {dimension_numbers = #tpu.dot_dimension_numbers<[1], [0], [0], [1], [0, 0, 1, 1], [], []>} : vector<128x256xbf16>, vector<256x256xbf16>, vector<128x256xf32> -> vector<128x256xf32>
    %c0_8 = arith.constant 0 : index
    %c0_9 = arith.constant 0 : index
    %11 = vector.load %arg5[%c0_8, %c0_9] : memref<1x256xf32, #tpu.memory_space<vmem>>, vector<1x256xf32>
    %12 = vector.broadcast %11 : vector<1x256xf32> to vector<128x256xf32>
    %13 = arith.addf %10, %12 : vector<128x256xf32>
    %14 = vector.extract_strided_slice %13 {offsets = [0, 0], sizes = [128, 128], strides = [1, 1]} : vector<128x256xf32> to vector<128x128xf32>
    %15 = vector.extract_strided_slice %13 {offsets = [0, 128], sizes = [128, 128], strides = [1, 1]} : vector<128x256xf32> to vector<128x128xf32>
    %16 = math.exp %15 : vector<128x128xf32>
    %17 = arith.mulf %0, %16 : vector<128x128xf32>
    %18 = arith.addf %17, %14 : vector<128x128xf32>
    %c0_10 = arith.constant 0 : index
    %c0_11 = arith.constant 0 : index
    %19 = vector.load %arg6[%c0_10, %c0_11] : memref<128x128xf32, #tpu.memory_space<vmem>>, vector<128x128xf32>
    tpu.vector_store %arg6[%c0_10, %c0_11], %18 {strides = array<i32>} : memref<128x128xf32, #tpu.memory_space<vmem>>, vector<128x128xf32>,
    %cst_12 = arith.constant dense<0.000000e+00> : vector<128xf32>
    %20 = vector.multi_reduction <add>, %15, %cst_12 [1] : vector<128x128xf32> to vector<128xf32>
    %21 = vector.shape_cast %20 : vector<128xf32> to vector<128x1xf32>
    %c0_13 = arith.constant 0 : index
    %c0_14 = arith.constant 0 : index
    %22 = vector.load %arg7[%c0_13, %c0_14] : memref<128x1xf32, #tpu.memory_space<vmem>>, vector<128x1xf32>
    tpu.vector_store %arg7[%c0_13, %c0_14], %21 {strides = array<i32>} : memref<128x1xf32, #tpu.memory_space<vmem>>, vector<128x1xf32>,
    return
  }
  func.func @transform_0(%arg0: i32) -> (i32, i32) {
    %c0_i32 = arith.constant 0 : i32
    %c0_i32_0 = arith.constant 0 : i32
    return %arg0, %c0_i32 : i32, i32
  }
  func.func @transform_1(%arg0: i32) -> (i32, i32) {
    %c0_i32 = arith.constant 0 : i32
    %c0_i32_0 = arith.constant 0 : i32
    %c0_i32_1 = arith.constant 0 : i32
    return %c0_i32, %c0_i32_0 : i32, i32
  }
  func.func @transform_2(%arg0: i32) -> (i32, i32) {
    %c0_i32 = arith.constant 0 : i32
    %c0_i32_0 = arith.constant 0 : i32
    %c0_i32_1 = arith.constant 0 : i32
    return %c0_i32, %c0_i32_0 : i32, i32
  }
  func.func @transform_3(%arg0: i32) -> (i32, i32) {
    %c0_i32 = arith.constant 0 : i32
    %c0_i32_0 = arith.constant 0 : i32
    %c0_i32_1 = arith.constant 0 : i32
    return %c0_i32, %c0_i32_0 : i32, i32
  }
  func.func @transform_4(%arg0: i32) -> (i32, i32) {
    %c0_i32 = arith.constant 0 : i32
    %c0_i32_0 = arith.constant 0 : i32
    %c0_i32_1 = arith.constant 0 : i32
    return %c0_i32, %c0_i32_0 : i32, i32
  }
  func.func @transform_5(%arg0: i32) -> (i32, i32) {
    %c0_i32 = arith.constant 0 : i32
    %c0_i32_0 = arith.constant 0 : i32
    return %arg0, %c0_i32 : i32, i32
  }
  func.func @transform_6(%arg0: i32) -> (i32, i32) {
    %c0_i32 = arith.constant 0 : i32
    %c0_i32_0 = arith.constant 0 : i32
    return %arg0, %c0_i32 : i32, i32
  }
}

</mosaic_0001>

<llo_original>
// kernel: tpu_custom_call.1
$region0: #{tpu_custom_call.1}
  #allocation0 [shape = 'u32[]', space=smem, size = 0x4, offset = 0x4, fixed_abs, tag = 'smem constant byte address 0x4 - core index']
  #allocation1 [shape = 'u32[144,128]{1,0:T(1,128)}', space=vmem, size = 0x12000, scoped, tag = 'internal scratch']
  %s0 = inlined_call_operand.hbm [shape: f32[256,128], index: 0, kind: input, shape index: {}]
  %s1 = inlined_call_operand.hbm [shape: bf16[128,256], index: 1, kind: input, shape index: {}]
  %s2 = inlined_call_operand.vmem [shape: f32[1,256], index: 2, kind: input, shape index: {}]
  %s3 = inlined_call_operand.hbm [shape: bf16[256,256], index: 3, kind: input, shape index: {}]
  %s4 = inlined_call_operand.vmem [shape: f32[1,256], index: 4, kind: input, shape index: {}]
  %s5 = inlined_call_operand.hbm [shape: f32[256,128], index: 5, kind: output, shape index: {0}]
  %s6 = inlined_call_operand.vmem [shape: f32[256,1], index: 6, kind: output, shape index: {1}]
  %7 = xla_tuple %s5, %s6
  %s8 = sld [smem:[#allocation0]]
  $region73: #{tpu_custom_call.1} parent=0
    _
  %s10 = ssub.s32 1, %s8
  %s11 = scalar_select 0, %s10, %s8
  $region1: #{tpu_custom_call.1} parent=0
    #allocation2 [shape = 'u8[131072]{0}', space=vmem, size = 0x20000, scoped, tag = 'input window, operand 0']
    #allocation3 [shape = 's32[2]{0}', space=sflag, size = 0x8, scoped, tag = 'scoped memory for tpu_custom_call.1']
    #allocation4 [shape = 's32[2]{0}', space=sflag, size = 0x8, scoped, tag = 'scoped memory for tpu_custom_call.1']
    #allocation5 [shape = 'u8[65536]{0}', space=vmem, size = 0x10000, scoped, tag = 'input window, operand 1, single buffered']
    #allocation6 [shape = 's32[1]{0}', space=sflag, size = 0x4, scoped, tag = 'scoped memory for tpu_custom_call.1']
    #allocation7 [shape = 'u8[131072]{0}', space=vmem, size = 0x20000, scoped, tag = 'input window, operand 3, single buffered']
    #allocation8 [shape = 'u8[131072]{0}', space=vmem, size = 0x20000, scoped, tag = 'output window, operand 0']
    %12 = vsyncpa [#allocation3], 0
    %s13 = scalar_lea.sflag [#allocation3], 1
    %14 = vsyncpa %s13, 0
    %15 = vsyncpa [#allocation6], 0
    %16 = vsyncpa [#allocation4], 0
    %s17 = scalar_lea.sflag [#allocation4], 1
    %18 = vsyncpa %s17, 0
    loop: start=0, step=1, limit=4
    $region2: #{tpu_custom_call.1} parent=1 // loop_pre_header
      _
    $region3: #{tpu_custom_call.1} parent=1 // loop_header
      %s20 = sphi 0, %s24
      %p21 = scmp.ge.s32.totalorder %s20, 4
      %s30 = sphi 0, %s32
      %s33 = sphi 0, %s30
      %s34 = sphi 0, %s33
      %s50 = sphi 0, %s34
      %s54 = sphi 0, %s54
      %s56 = sphi 0, %s54
      %s57 = sphi 0, %s56
      %s71 = sphi 0, %s57
      %s75 = sphi 0, %s75
      %s77 = sphi 0, %s75
      %s78 = sphi 0, %s77
      %s92 = sphi 0, %s78
      %s96 = sphi 0, %s96
      %s98 = sphi 0, %s96
      %s99 = sphi 0, %s98
      %s113 = sphi 0, %s99
      %s117 = sphi 0, %s117
      %s119 = sphi 0, %s117
      %s120 = sphi 0, %s119
      %s134 = sphi 0, %s120
      %s140 = sphi 0, %s142
      %s143 = sphi 0, %s140
      %s144 = sphi 0, %s143
      %s160 = sphi 0, %s144
      %s166 = sphi 0, %s168
      %s169 = sphi 0, %s166
      %s170 = sphi 0, %s169
      %s186 = sphi 0, %s170
    $region4: #{tpu_custom_call.1} parent=1 // loop_header_branch
      %23 = sbr.rel (%p21) target = $region8
    $region5: #{tpu_custom_call.1} parent=1 // loop_body
      %s25 = ssub.s32 %s20, 1
      %s26 = ssub.s32 %s20, 2
      %s27 = sadd.s32 %s20, 1
      %s28 = ssub.s32 %s20, %s27
      %p29 = scmp.eq.s32.totalorder %s28, 0
      %s31 = sadd.s32 %s30, 1
      %s32 = scalar_select %p29, %s30, %s31
      %p35 = pneg %p29
      %p36 = scmp.eq.s32.totalorder %s20, 1
      %p37 = por %p35, %p36
      %p38 = scmp.ne.s32.totalorder %s30, %s33
      %p39 = scmp.eq.s32.totalorder %s20, 0
      %p40 = por %p38, %p39
      %p41 = scmp.ne.s32.totalorder %s30, %s33
      %p42 = scmp.eq.s32.totalorder %s25, 1
      %p43 = por %p41, %p42
      %p44 = scmp.ne.s32.totalorder %s33, %s34
      %p45 = scmp.eq.s32.totalorder %s25, 0
      %p46 = por %p44, %p45
      %p47 = scmp.ne.s32.totalorder %s33, %s34
      %p48 = scmp.eq.s32.totalorder %s26, 1
      %p49 = por %p47, %p48
      %p51 = scmp.ne.s32.totalorder %s34, %s50
      %p52 = scmp.eq.s32.totalorder %s26, 0
      %p53 = por %p51, %p52
      %s55 = sadd.s32 %s54, 1
      %p58 = scmp.eq.s32.totalorder %s20, 1
      %p59 = scmp.ne.s32.totalorder %s54, %s56
      %p60 = scmp.eq.s32.totalorder %s20, 0
      %p61 = por %p59, %p60
      %p62 = scmp.ne.s32.totalorder %s54, %s56
      %p63 = scmp.eq.s32.totalorder %s25, 1
      %p64 = por %p62, %p63
      %p65 = scmp.ne.s32.totalorder %s56, %s57
      %p66 = scmp.eq.s32.totalorder %s25, 0
      %p67 = por %p65, %p66
      %p68 = scmp.ne.s32.totalorder %s56, %s57
      %p69 = scmp.eq.s32.totalorder %s26, 1
      %p70 = por %p68, %p69
      %p72 = scmp.ne.s32.totalorder %s57, %s71
      %p73 = scmp.eq.s32.totalorder %s26, 0
      %p74 = por %p72, %p73
      %s76 = sadd.s32 %s75, 1
      %p79 = scmp.eq.s32.totalorder %s20, 1
      %p80 = scmp.ne.s32.totalorder %s75, %s77
      %p81 = scmp.eq.s32.totalorder %s20, 0
      %p82 = por %p80, %p81
      %p83 = scmp.ne.s32.totalorder %s75, %s77
      %p84 = scmp.eq.s32.totalorder %s25, 1
      %p85 = por %p83, %p84
      %p86 = scmp.ne.s32.totalorder %s77, %s78
      %p87 = scmp.eq.s32.totalorder %s25, 0
      %p88 = por %p86, %p87
      %p89 = scmp.ne.s32.totalorder %s77, %s78
      %p90 = scmp.eq.s32.totalorder %s26, 1
      %p91 = por %p89, %p90
      %p93 = scmp.ne.s32.totalorder %s78, %s92
      %p94 = scmp.eq.s32.totalorder %s26, 0
      %p95 = por %p93, %p94
      %s97 = sadd.s32 %s96, 1
      %p100 = scmp.eq.s32.totalorder %s20, 1
      %p101 = scmp.ne.s32.totalorder %s96, %s98
      %p102 = scmp.eq.s32.totalorder %s20, 0
      %p103 = por %p101, %p102
      %p104 = scmp.ne.s32.totalorder %s96, %s98
      %p105 = scmp.eq.s32.totalorder %s25, 1
      %p106 = por %p104, %p105
      %p107 = scmp.ne.s32.totalorder %s98, %s99
      %p108 = scmp.eq.s32.totalorder %s25, 0
      %p109 = por %p107, %p108
      %p110 = scmp.ne.s32.totalorder %s98, %s99
      %p111 = scmp.eq.s32.totalorder %s26, 1
      %p112 = por %p110, %p111
      %p114 = scmp.ne.s32.totalorder %s99, %s113
      %p115 = scmp.eq.s32.totalorder %s26, 0
      %p116 = por %p114, %p115
      %s118 = sadd.s32 %s117, 1
      %p121 = scmp.eq.s32.totalorder %s20, 1
      %p122 = scmp.ne.s32.totalorder %s117, %s119
      %p123 = scmp.eq.s32.totalorder %s20, 0
      %p124 = por %p122, %p123
      %p125 = scmp.ne.s32.totalorder %s117, %s119
      %p126 = scmp.eq.s32.totalorder %s25, 1
      %p127 = por %p125, %p126
      %p128 = scmp.ne.s32.totalorder %s119, %s120
      %p129 = scmp.eq.s32.totalorder %s25, 0
      %p130 = por %p128, %p129
      %p131 = scmp.ne.s32.totalorder %s119, %s120
      %p132 = scmp.eq.s32.totalorder %s26, 1
      %p133 = por %p131, %p132
      %p135 = scmp.ne.s32.totalorder %s120, %s134
      %p136 = scmp.eq.s32.totalorder %s26, 0
      %p137 = por %p135, %p136
      %s138 = ssub.s32 %s20, %s27
      %p139 = scmp.eq.s32.totalorder %s138, 0
      %s141 = sadd.s32 %s140, 1
      %s142 = scalar_select %p139, %s140, %s141
      %p145 = pneg %p139
      %p146 = scmp.eq.s32.totalorder %s20, 1
      %p147 = por %p145, %p146
      %p148 = scmp.ne.s32.totalorder %s140, %s143
      %p149 = scmp.eq.s32.totalorder %s20, 0
      %p150 = por %p148, %p149
      %p151 = scmp.ne.s32.totalorder %s140, %s143
      %p152 = scmp.eq.s32.totalorder %s25, 1
      %p153 = por %p151, %p152
      %p154 = scmp.ne.s32.totalorder %s143, %s144
      %p155 = scmp.eq.s32.totalorder %s25, 0
      %p156 = por %p154, %p155
      %p157 = scmp.ne.s32.totalorder %s143, %s144
      %p158 = scmp.eq.s32.totalorder %s26, 1
      %p159 = por %p157, %p158
      %p161 = scmp.ne.s32.totalorder %s144, %s160
      %p162 = scmp.eq.s32.totalorder %s26, 0
      %p163 = por %p161, %p162
      %s164 = ssub.s32 %s20, %s27
      %p165 = scmp.eq.s32.totalorder %s164, 0
      %s167 = sadd.s32 %s166, 1
      %s168 = scalar_select %p165, %s166, %s167
      %p171 = pneg %p165
      %p172 = scmp.eq.s32.totalorder %s20, 1
      %p173 = por %p171, %p172
      %p174 = scmp.ne.s32.totalorder %s166, %s169
      %p175 = scmp.eq.s32.totalorder %s20, 0
      %p176 = por %p174, %p175
      %p177 = scmp.ne.s32.totalorder %s166, %s169
      %p178 = scmp.eq.s32.totalorder %s25, 1
      %p179 = por %p177, %p178
      %p180 = scmp.ne.s32.totalorder %s169, %s170
      %p181 = scmp.eq.s32.totalorder %s25, 0
      %p182 = por %p180, %p181
      %p183 = scmp.ne.s32.totalorder %s169, %s170
      %p184 = scmp.eq.s32.totalorder %s26, 1
      %p185 = por %p183, %p184
      %p187 = scmp.ne.s32.totalorder %s170, %s186
      %p188 = scmp.eq.s32.totalorder %s26, 0
      %p189 = por %p187, %p188
      %p190 = scmp.le.s32.totalorder 1, %s20
      %p191 = scmp.lt.s32.totalorder %s20, 3
      %p192 = pnand %p190, %p191
      %p193 = pneg %p192
      // Predicated region
      $region9: #{tpu_custom_call.1} parent=5 // pred_check
        _
      $region10: #{tpu_custom_call.1} parent=5 // pred_check_branch
        %195 = sbr.rel (%p192) target = $region12
      $region11: #{tpu_custom_call.1} parent=5 // pred_region
        %s196 = ssub.s32 %s20, 1
        // Predicated region
        $region13: #{tpu_custom_call.1} parent=11 // pred_check
          %p197 = pneg %p67
        $region14: #{tpu_custom_call.1} parent=11 // pred_check_branch
          %199 = sbr.rel (%p197) target = $region16
        $region15: #{tpu_custom_call.1} parent=11 // pred_region
          %s201 = ssub.s32 2048, 2048
          %202 = vsyncadd [#allocation6], %s201
          %s203 = sshll.u32 [#allocation5], 4
          %s204 = int_to_ptr.vmem [resolvable:$true] %s203
          %209 = dma.hbm_to_vmem [thread:$0]  %s1, 2048, %s204, [#allocation6], 128, 128, 8
        $region16: #{tpu_custom_call.1} parent=11 // pred_fallthru
          _
        // Predicated region
        $region17: #{tpu_custom_call.1} parent=11 // pred_check
          %p210 = pneg %p88
        $region18: #{tpu_custom_call.1} parent=11 // pred_check_branch
          %212 = sbr.rel (%p210) target = $region20
        $region19: #{tpu_custom_call.1} parent=11 // pred_region
          _
        $region20: #{tpu_custom_call.1} parent=11 // pred_fallthru
          _
        // Predicated region
        $region21: #{tpu_custom_call.1} parent=11 // pred_check
          %p213 = pneg %p109
        $region22: #{tpu_custom_call.1} parent=11 // pred_check_branch
          %215 = sbr.rel (%p213) target = $region24
        $region23: #{tpu_custom_call.1} parent=11 // pred_region
          %s217 = ssub.s32 4096, 4096
          %218 = vsyncadd [#allocation6], %s217
          %s219 = sshll.u32 [#allocation7], 4
          %s220 = int_to_ptr.vmem [resolvable:$true] %s219
          %225 = dma.hbm_to_vmem [thread:$0]  %s3, 4096, %s220, [#allocation6], 128, 128, 8
        $region24: #{tpu_custom_call.1} parent=11 // pred_fallthru
          _
        // Predicated region
        $region25: #{tpu_custom_call.1} parent=11 // pred_check
          %p226 = pneg %p130
        $region26: #{tpu_custom_call.1} parent=11 // pred_check_branch
          %228 = sbr.rel (%p226) target = $region28
        $region27: #{tpu_custom_call.1} parent=11 // pred_region
          _
        $region28: #{tpu_custom_call.1} parent=11 // pred_fallthru
          _
      $region12: #{tpu_custom_call.1} parent=5 // pred_fallthru
        _
      %p229 = scmp.lt.s32.totalorder %s20, 2
      // Predicated region
      $region29: #{tpu_custom_call.1} parent=5 // pred_check
        %p230 = pneg %p229
      $region30: #{tpu_custom_call.1} parent=5 // pred_check_branch
        %232 = sbr.rel (%p230) target = $region32
      $region31: #{tpu_custom_call.1} parent=5 // pred_region
        // Predicated region
        $region33: #{tpu_custom_call.1} parent=31 // pred_check
          %p233 = pneg %p40
        $region34: #{tpu_custom_call.1} parent=31 // pred_check_branch
          %235 = sbr.rel (%p233) target = $region36
        $region35: #{tpu_custom_call.1} parent=31 // pred_region
          %s236 = sand.u32 %s30, 1
          %s237 = scalar_lea.sflag [#allocation3], %s236
          %s238 = sand.u32 %s30, 1
          %s239 = smul.addr %s238, 128
          %s240 = scalar_lea.vmem [#allocation2], %s239
          %s241 = smul.u32 16, %s20
          %s243 = ssub.s32 2048, 2048
          %244 = vsyncadd %s237, %s243
          %s245 = smul.addr %s241, 128
          %s246 = scalar_lea.hbm %s0, %s245
          %s247 = sshll.u32 %s240, 4
          %s248 = int_to_ptr.vmem [resolvable:$true] %s247
          %253 = dma.hbm_to_vmem [thread:$0]  %s246, 2048, %s248, %s237, 128, 128, 8
        $region36: #{tpu_custom_call.1} parent=31 // pred_fallthru
          _
      $region32: #{tpu_custom_call.1} parent=5 // pred_fallthru
        _
      %p254 = scmp.le.s32.totalorder 1, %s20
      %p255 = scmp.lt.s32.totalorder %s20, 3
      %p256 = pnand %p254, %p255
      %p257 = pneg %p256
      // Predicated region
      $region37: #{tpu_custom_call.1} parent=5 // pred_check
        _
      $region38: #{tpu_custom_call.1} parent=5 // pred_check_branch
        %259 = sbr.rel (%p256) target = $region40
      $region39: #{tpu_custom_call.1} parent=5 // pred_region
        %s260 = ssub.s32 %s20, 1
        %s261 = sand.u32 %s33, 1
        %s262 = scalar_lea.sflag [#allocation3], %s261
        %s263 = sand.u32 %s33, 1
        %s264 = smul.addr %s263, 128
        %s265 = scalar_lea.vmem [#allocation2], %s264
        // Predicated region
        $region41: #{tpu_custom_call.1} parent=39 // pred_check
          %p266 = pneg %p46
        $region42: #{tpu_custom_call.1} parent=39 // pred_check_branch
          %268 = sbr.rel (%p266) target = $region44
        $region43: #{tpu_custom_call.1} parent=39 // pred_region
          %269 = dma.done %s262, 2048
        $region44: #{tpu_custom_call.1} parent=39 // pred_fallthru
          _
        // Predicated region
        $region45: #{tpu_custom_call.1} parent=39 // pred_check
          %p270 = pneg %p67
        $region46: #{tpu_custom_call.1} parent=39 // pred_check_branch
          %272 = sbr.rel (%p270) target = $region48
        $region47: #{tpu_custom_call.1} parent=39 // pred_region
          %273 = dma.done [#allocation6], 2048
        $region48: #{tpu_custom_call.1} parent=39 // pred_fallthru
          _
        // Predicated region
        $region49: #{tpu_custom_call.1} parent=39 // pred_check
          %p274 = pneg %p109
        $region50: #{tpu_custom_call.1} parent=39 // pred_check_branch
          %276 = sbr.rel (%p274) target = $region52
        $region51: #{tpu_custom_call.1} parent=39 // pred_region
          %277 = dma.done [#allocation6], 4096
        $region52: #{tpu_custom_call.1} parent=39 // pred_fallthru
          _
        %s278 = sand.u32 %s33, 1
        %s279 = scalar_lea.sflag [#allocation3], %s278
        %s280 = sand.u32 %s33, 1
        %s281 = smul.addr %s280, 128
        %s282 = scalar_lea.vmem [#allocation2], %s281
        %p283 = pneg %p46
        %p284 = pneg %p43
        %p285 = pneg %p67
        %p286 = pneg %p64
        %p287 = pneg %p88
        %p288 = pneg %p85
        %p289 = pneg %p109
        %p290 = pneg %p106
        %p291 = pneg %p130
        %p292 = pneg %p127
        %p293 = pneg %p156
        %p294 = pneg %p153
        %s295 = sand.u32 %s143, 1
        %s296 = scalar_lea.sflag [#allocation4], %s295
        %s297 = sand.u32 %s143, 1
        %s298 = smul.addr %s297, 128
        %s299 = scalar_lea.vmem [#allocation8], %s298
        %p300 = pneg %p182
        %p301 = pneg %p179
        %s302 = smul.u32 16, %s25
        %p303 = scmp.lt.s32.totalorder %s302, 31
        %s304 = scalar_select %p303, %s302, 31
        %s305 = smul.addr %s304, 8
        %s306 = scalar_lea.vmem %s6, %s305
        %s307 = smul.u32 16, %s25
        %s308 = smul.u32 16, %s25
        %s309 = smul.u32 16, %s25
        %p310 = scmp.lt.s32.totalorder %s309, 31
        %s311 = scalar_select %p310, %s309, 31
        %s312 = smul.addr %s311, 8
        %s313 = scalar_lea.vmem %s6, %s312
        %s314 = smul.u32 16, %s25
        %v316 = vld [vmem:[%s265] sm:$0xff]
        %v317 = vld [vmem:[%s265 + $0x8] sm:$0xff]
        %v318 = vld [vmem:[%s265 + $0x10] sm:$0xff]
        %v319 = vld [vmem:[%s265 + $0x18] sm:$0xff]
        %v320 = vld [vmem:[%s265 + $0x20] sm:$0xff]
        %v321 = vld [vmem:[%s265 + $0x28] sm:$0xff]
        %v322 = vld [vmem:[%s265 + $0x30] sm:$0xff]
        %v323 = vld [vmem:[%s265 + $0x38] sm:$0xff]
        %v324 = vld [vmem:[%s265 + $0x40] sm:$0xff]
        %v325 = vld [vmem:[%s265 + $0x48] sm:$0xff]
        %v326 = vld [vmem:[%s265 + $0x50] sm:$0xff]
        %v327 = vld [vmem:[%s265 + $0x58] sm:$0xff]
        %v328 = vld [vmem:[%s265 + $0x60] sm:$0xff]
        %v329 = vld [vmem:[%s265 + $0x68] sm:$0xff]
        %v330 = vld [vmem:[%s265 + $0x70] sm:$0xff]
        %v331 = vld [vmem:[%s265 + $0x78] sm:$0xff]
        %v332 = vpack.c.bf16 %v317, %v316
        %v333 = vpack.c.bf16 %v319, %v318
        %v334 = vpack.c.bf16 %v321, %v320
        %v335 = vpack.c.bf16 %v323, %v322
        %v336 = vpack.c.bf16 %v325, %v324
        %v337 = vpack.c.bf16 %v327, %v326
        %v338 = vpack.c.bf16 %v329, %v328
        %v339 = vpack.c.bf16 %v331, %v330
        %v340 = vld [vmem:[#allocation5] sm:$0xff]
        %v341 = vld [vmem:[#allocation5 + $0x8] sm:$0xff]
        %v342 = vld [vmem:[#allocation5 + $0x10] sm:$0xff]
        %v343 = vld [vmem:[#allocation5 + $0x18] sm:$0xff]
        %v344 = vld [vmem:[#allocation5 + $0x20] sm:$0xff]
        %v345 = vld [vmem:[#allocation5 + $0x28] sm:$0xff]
        %v346 = vld [vmem:[#allocation5 + $0x30] sm:$0xff]
        %v347 = vld [vmem:[#allocation5 + $0x38] sm:$0xff]
        %v348 = vld [vmem:[#allocation5 + $0x40] sm:$0xff]
        %v349 = vld [vmem:[#allocation5 + $0x48] sm:$0xff]
        %v350 = vld [vmem:[#allocation5 + $0x50] sm:$0xff]
        %v351 = vld [vmem:[#allocation5 + $0x58] sm:$0xff]
        %v352 = vld [vmem:[#allocation5 + $0x60] sm:$0xff]
        %v353 = vld [vmem:[#allocation5 + $0x68] sm:$0xff]
        %v354 = vld [vmem:[#allocation5 + $0x70] sm:$0xff]
        %v355 = vld [vmem:[#allocation5 + $0x78] sm:$0xff]
        %v356 = vld [vmem:[%s2] sm:$0x3]
        %v358 = vlaneseq
        %v359 = vshrl.u32 %v358, 7
        %v360 = vsub.s32 0, %v359
        %v361 = vrot.slane %v356, %v360
        %v362 = vlaneseq
        %v363 = vshrl.u32 %v362, 7
        %v364 = vsub.s32 1, %v363
        %v365 = vrot.slane %v356, %v364
        %v384 = vunpack.c.l.b16 %v340
        %v385 = vunpack.c.h.b16 %v340
        %v386 = vunpack.c.l.b16 %v341
        %v387 = vunpack.c.h.b16 %v341
        %v388 = vunpack.c.l.b16 %v342
        %v389 = vunpack.c.h.b16 %v342
        %v390 = vunpack.c.l.b16 %v343
        %v391 = vunpack.c.h.b16 %v343
        %v392 = vunpack.c.l.b16 %v344
        %v393 = vunpack.c.h.b16 %v344
        %v394 = vunpack.c.l.b16 %v345
        %v395 = vunpack.c.h.b16 %v345
        %v396 = vunpack.c.l.b16 %v346
        %v397 = vunpack.c.h.b16 %v346
        %v398 = vunpack.c.l.b16 %v347
        %v399 = vunpack.c.h.b16 %v347
        %v400 = vunpack.c.l.b16 %v348
        %v401 = vunpack.c.h.b16 %v348
        %v402 = vunpack.c.l.b16 %v349
        %v403 = vunpack.c.h.b16 %v349
        %v404 = vunpack.c.l.b16 %v350
        %v405 = vunpack.c.h.b16 %v350
        %v406 = vunpack.c.l.b16 %v351
        %v407 = vunpack.c.h.b16 %v351
        %v408 = vunpack.c.l.b16 %v352
        %v409 = vunpack.c.h.b16 %v352
        %v410 = vunpack.c.l.b16 %v353
        %v411 = vunpack.c.h.b16 %v353
        %v412 = vunpack.c.l.b16 %v354
        %v413 = vunpack.c.h.b16 %v354
        %v414 = vunpack.c.l.b16 %v355
        %v415 = vunpack.c.h.b16 %v355
        %v416 = vpack.c.b16 %v386, %v384
        %v417 = vpack.c.b16 %v387, %v385
        %v418 = vpack.c.b16 %v390, %v388
        %v419 = vpack.c.b16 %v391, %v389
        %v420 = vpack.c.b16 %v394, %v392
        %v421 = vpack.c.b16 %v395, %v393
        %v422 = vpack.c.b16 %v398, %v396
        %v423 = vpack.c.b16 %v399, %v397
        %v424 = vpack.c.b16 %v402, %v400
        %v425 = vpack.c.b16 %v403, %v401
        %v426 = vpack.c.b16 %v406, %v404
        %v427 = vpack.c.b16 %v407, %v405
        %v428 = vpack.c.b16 %v410, %v408
        %v429 = vpack.c.b16 %v411, %v409
        %v430 = vpack.c.b16 %v414, %v412
        %v431 = vpack.c.b16 %v415, %v413
        %448 = vmatprep.subr.bf16.mxu0 %v417
        %449 = vmatpush1.bf16.msra.mxu0 %v416
        %450 = vmatprep.subr.bf16.mxu0 %v419
        %451 = vmatpush1.bf16.msra.mxu0 %v418
        %452 = vmatprep.subr.bf16.mxu0 %v421
        %453 = vmatpush1.bf16.msra.mxu0 %v420
        %454 = vmatprep.subr.bf16.mxu0 %v423
        %455 = vmatpush1.bf16.msra.mxu0 %v422
        %456 = vmatprep.subr.bf16.mxu0 %v425
        %457 = vmatpush1.bf16.msra.mxu0 %v424
        %458 = vmatprep.subr.bf16.mxu0 %v427
        %459 = vmatpush1.bf16.msra.mxu0 %v426
        %460 = vmatprep.subr.bf16.mxu0 %v429
        %461 = vmatpush1.bf16.msra.mxu0 %v428
        %462 = vmatprep.subr.bf16.mxu0 %v431
        %463 = vmatpush1.bf16.msra.mxu0 %v430
        %464 = vmatprep.subr.bf16.mxu0 0
        %465 = vmatpush1.bf16.msra.mxu0 0
        %466 = vmatprep.subr.bf16.mxu0 0
        %467 = vmatpush1.bf16.msra.mxu0 0
        %468 = vmatprep.subr.bf16.mxu0 0
        %469 = vmatpush1.bf16.msra.mxu0 0
        %470 = vmatprep.subr.bf16.mxu0 0
        %471 = vmatpush1.bf16.msra.mxu0 0
        %472 = vmatprep.subr.bf16.mxu0 0
        %473 = vmatpush1.bf16.msra.mxu0 0
        %474 = vmatprep.subr.bf16.mxu0 0
        %475 = vmatpush1.bf16.msra.mxu0 0
        %476 = vmatprep.subr.bf16.mxu0 0
        %477 = vmatpush1.bf16.msra.mxu0 0
        %478 = vmatprep.subr.bf16.mxu0 0
        %479 = vmatpush1.bf16.msra.mxu0 0
        %480 = vmatprep.mubr.bf16.mxu0 0
        %481 = vmatmul.mubr.bf16.gmra.mrb[0].mxu0 %v332
        %v482 = vpop.f32.mrb[0].mxu0
        %v483 = vadd.f32 %v361, %v482
        %v484 = vpop.f32.mrb[0].mxu0
        %v485 = vadd.f32 %v365, %v484
        %v486 = vpop.f32.mrb[0].mxu0
        %v487 = vadd.f32 %v361, %v486
        %v488 = vpop.f32.mrb[0].mxu0
        %v489 = vadd.f32 %v365, %v488
        %490 = vmatprep.mubr.bf16.mxu0 0
        %491 = vmatmul.mubr.bf16.gmra.mrb[0].mxu0 %v333
        %v492 = vpop.f32.mrb[0].mxu0
        %v493 = vadd.f32 %v361, %v492
        %v494 = vpop.f32.mrb[0].mxu0
        %v495 = vadd.f32 %v365, %v494
        %v496 = vpop.f32.mrb[0].mxu0
        %v497 = vadd.f32 %v361, %v496
        %v498 = vpop.f32.mrb[0].mxu0
        %v499 = vadd.f32 %v365, %v498
        %500 = vmatprep.mubr.bf16.mxu0 0
        %501 = vmatmul.mubr.bf16.gmra.mrb[0].mxu0 %v334
        %v502 = vpop.f32.mrb[0].mxu0
        %v503 = vadd.f32 %v361, %v502
        %v504 = vpop.f32.mrb[0].mxu0
        %v505 = vadd.f32 %v365, %v504
        %v506 = vpop.f32.mrb[0].mxu0
        %v507 = vadd.f32 %v361, %v506
        %v508 = vpop.f32.mrb[0].mxu0
        %v509 = vadd.f32 %v365, %v508
        %510 = vmatprep.mubr.bf16.mxu0 0
        %511 = vmatmul.mubr.bf16.gmra.mrb[0].mxu0 %v335
        %v512 = vpop.f32.mrb[0].mxu0
        %v513 = vadd.f32 %v361, %v512
        %v514 = vpop.f32.mrb[0].mxu0
        %v515 = vadd.f32 %v365, %v514
        %v516 = vpop.f32.mrb[0].mxu0
        %v517 = vadd.f32 %v361, %v516
        %v518 = vpop.f32.mrb[0].mxu0
        %v519 = vadd.f32 %v365, %v518
        %520 = vmatprep.mubr.bf16.mxu0 0
        %521 = vmatmul.mubr.bf16.gmra.mrb[0].mxu0 %v336
        %v522 = vpop.f32.mrb[0].mxu0
        %v523 = vadd.f32 %v361, %v522
        %v524 = vpop.f32.mrb[0].mxu0
        %v525 = vadd.f32 %v365, %v524
        %v526 = vpop.f32.mrb[0].mxu0
        %v527 = vadd.f32 %v361, %v526
        %v528 = vpop.f32.mrb[0].mxu0
        %v529 = vadd.f32 %v365, %v528
        %530 = vmatprep.mubr.bf16.mxu0 0
        %531 = vmatmul.mubr.bf16.gmra.mrb[0].mxu0 %v337
        %v532 = vpop.f32.mrb[0].mxu0
        %v533 = vadd.f32 %v361, %v532
        %v534 = vpop.f32.mrb[0].mxu0
        %v535 = vadd.f32 %v365, %v534
        %v536 = vpop.f32.mrb[0].mxu0
        %v537 = vadd.f32 %v361, %v536
        %v538 = vpop.f32.mrb[0].mxu0
        %v539 = vadd.f32 %v365, %v538
        %540 = vmatprep.mubr.bf16.mxu0 0
        %541 = vmatmul.mubr.bf16.gmra.mrb[0].mxu0 %v338
        %v542 = vpop.f32.mrb[0].mxu0
        %v543 = vadd.f32 %v361, %v542
        %v544 = vpop.f32.mrb[0].mxu0
        %v545 = vadd.f32 %v365, %v544
        %v546 = vpop.f32.mrb[0].mxu0
        %v547 = vadd.f32 %v361, %v546
        %v548 = vpop.f32.mrb[0].mxu0
        %v549 = vadd.f32 %v365, %v548
        %550 = vmatprep.mubr.bf16.mxu0 0
        %551 = vmatmul.mubr.bf16.gmra.mrb[0].mxu0 %v339
        %v552 = vpop.f32.mrb[0].mxu0
        %v553 = vadd.f32 %v361, %v552
        %v554 = vpop.f32.mrb[0].mxu0
        %v555 = vadd.f32 %v365, %v554
        %v556 = vpop.f32.mrb[0].mxu0
        %v557 = vadd.f32 %v361, %v556
        %v558 = vpop.f32.mrb[0].mxu0
        %v559 = vadd.f32 %v365, %v558
        %560 = vdwg.mxu0
        %v561 = vtanh.pop %v483
        %v562 = vtanh.pop %v485
        %v563 = vtanh.pop %v487
        %v564 = vtanh.pop %v489
        %v565 = vtanh.pop %v493
        %v566 = vtanh.pop %v495
        %v567 = vtanh.pop %v497
        %v568 = vtanh.pop %v499
        %v569 = vtanh.pop %v503
        %v570 = vtanh.pop %v505
        %v571 = vtanh.pop %v507
        %v572 = vtanh.pop %v509
        %v573 = vtanh.pop %v513
        %v574 = vtanh.pop %v515
        %v575 = vtanh.pop %v517
        %v576 = vtanh.pop %v519
        %v577 = vtanh.pop %v523
        %v578 = vtanh.pop %v525
        %v579 = vtanh.pop %v527
        %v580 = vtanh.pop %v529
        %v581 = vtanh.pop %v533
        %v582 = vtanh.pop %v535
        %v583 = vtanh.pop %v537
        %v584 = vtanh.pop %v539
        %v585 = vtanh.pop %v543
        %v586 = vtanh.pop %v545
        %v587 = vtanh.pop %v547
        %v588 = vtanh.pop %v549
        %v589 = vtanh.pop %v553
        %v590 = vtanh.pop %v555
        %v591 = vtanh.pop %v557
        %v592 = vtanh.pop %v559
        %v593 = vpack.c.bf16 %v563, %v561
        %v594 = vpack.c.bf16 %v564, %v562
        %v595 = vpack.c.bf16 %v567, %v565
        %v596 = vpack.c.bf16 %v568, %v566
        %v597 = vpack.c.bf16 %v571, %v569
        %v598 = vpack.c.bf16 %v572, %v570
        %v599 = vpack.c.bf16 %v575, %v573
        %v600 = vpack.c.bf16 %v576, %v574
        %v601 = vpack.c.bf16 %v579, %v577
        %v602 = vpack.c.bf16 %v580, %v578
        %v603 = vpack.c.bf16 %v583, %v581
        %v604 = vpack.c.bf16 %v584, %v582
        %v605 = vpack.c.bf16 %v587, %v585
        %v606 = vpack.c.bf16 %v588, %v586
        %v607 = vpack.c.bf16 %v591, %v589
        %v608 = vpack.c.bf16 %v592, %v590
        %v609 = vld [vmem:[#allocation7] sm:$0xff]
        %v610 = vld [vmem:[#allocation7 + $0x8] sm:$0xff]
        %v611 = vld [vmem:[#allocation7 + $0x10] sm:$0xff]
        %v612 = vld [vmem:[#allocation7 + $0x18] sm:$0xff]
        %v613 = vld [vmem:[#allocation7 + $0x20] sm:$0xff]
        %v614 = vld [vmem:[#allocation7 + $0x28] sm:$0xff]
        %v615 = vld [vmem:[#allocation7 + $0x30] sm:$0xff]
        %v616 = vld [vmem:[#allocation7 + $0x38] sm:$0xff]
        %v617 = vld [vmem:[#allocation7 + $0x40] sm:$0xff]
        %v618 = vld [vmem:[#allocation7 + $0x48] sm:$0xff]
        %v619 = vld [vmem:[#allocation7 + $0x50] sm:$0xff]
        %v620 = vld [vmem:[#allocation7 + $0x58] sm:$0xff]
        %v621 = vld [vmem:[#allocation7 + $0x60] sm:$0xff]
        %v622 = vld [vmem:[#allocation7 + $0x68] sm:$0xff]
        %v623 = vld [vmem:[#allocation7 + $0x70] sm:$0xff]
        %v624 = vld [vmem:[#allocation7 + $0x78] sm:$0xff]
        %v625 = vld [vmem:[#allocation7 + $0x80] sm:$0xff]
        %v626 = vld [vmem:[#allocation7 + $0x88] sm:$0xff]
        %v627 = vld [vmem:[#allocation7 + $0x90] sm:$0xff]
        %v628 = vld [vmem:[#allocation7 + $0x98] sm:$0xff]
        %v629 = vld [vmem:[#allocation7 + $0xa0] sm:$0xff]
        %v630 = vld [vmem:[#allocation7 + $0xa8] sm:$0xff]
        %v631 = vld [vmem:[#allocation7 + $0xb0] sm:$0xff]
        %v632 = vld [vmem:[#allocation7 + $0xb8] sm:$0xff]
        %v633 = vld [vmem:[#allocation7 + $0xc0] sm:$0xff]
        %v634 = vld [vmem:[#allocation7 + $0xc8] sm:$0xff]
        %v635 = vld [vmem:[#allocation7 + $0xd0] sm:$0xff]
        %v636 = vld [vmem:[#allocation7 + $0xd8] sm:$0xff]
        %v637 = vld [vmem:[#allocation7 + $0xe0] sm:$0xff]
        %v638 = vld [vmem:[#allocation7 + $0xe8] sm:$0xff]
        %v639 = vld [vmem:[#allocation7 + $0xf0] sm:$0xff]
        %v640 = vld [vmem:[#allocation7 + $0xf8] sm:$0xff]
        %v641 = vld [vmem:[%s4] sm:$0x3]
        %v643 = vlaneseq
        %v644 = vshrl.u32 %v643, 7
        %v645 = vsub.s32 0, %v644
        %v646 = vrot.slane %v641, %v645
        %v647 = vlaneseq
        %v648 = vshrl.u32 %v647, 7
        %v649 = vsub.s32 1, %v648
        %v650 = vrot.slane %v641, %v649
        %v685 = vunpack.c.l.b16 %v609
        %v686 = vunpack.c.h.b16 %v609
        %v687 = vunpack.c.l.b16 %v610
        %v688 = vunpack.c.h.b16 %v610
        %v689 = vunpack.c.l.b16 %v611
        %v690 = vunpack.c.h.b16 %v611
        %v691 = vunpack.c.l.b16 %v612
        %v692 = vunpack.c.h.b16 %v612
        %v693 = vunpack.c.l.b16 %v613
        %v694 = vunpack.c.h.b16 %v613
        %v695 = vunpack.c.l.b16 %v614
        %v696 = vunpack.c.h.b16 %v614
        %v697 = vunpack.c.l.b16 %v615
        %v698 = vunpack.c.h.b16 %v615
        %v699 = vunpack.c.l.b16 %v616
        %v700 = vunpack.c.h.b16 %v616
        %v701 = vunpack.c.l.b16 %v617
        %v702 = vunpack.c.h.b16 %v617
        %v703 = vunpack.c.l.b16 %v618
        %v704 = vunpack.c.h.b16 %v618
        %v705 = vunpack.c.l.b16 %v619
        %v706 = vunpack.c.h.b16 %v619
        %v707 = vunpack.c.l.b16 %v620
        %v708 = vunpack.c.h.b16 %v620
        %v709 = vunpack.c.l.b16 %v621
        %v710 = vunpack.c.h.b16 %v621
        %v711 = vunpack.c.l.b16 %v622
        %v712 = vunpack.c.h.b16 %v622
        %v713 = vunpack.c.l.b16 %v623
        %v714 = vunpack.c.h.b16 %v623
        %v715 = vunpack.c.l.b16 %v624
        %v716 = vunpack.c.h.b16 %v624
        %v717 = vunpack.c.l.b16 %v625
        %v718 = vunpack.c.h.b16 %v625
        %v719 = vunpack.c.l.b16 %v626
        %v720 = vunpack.c.h.b16 %v626
        %v721 = vunpack.c.l.b16 %v627
        %v722 = vunpack.c.h.b16 %v627
        %v723 = vunpack.c.l.b16 %v628
        %v724 = vunpack.c.h.b16 %v628
        %v725 = vunpack.c.l.b16 %v629
        %v726 = vunpack.c.h.b16 %v629
        %v727 = vunpack.c.l.b16 %v630
        %v728 = vunpack.c.h.b16 %v630
        %v729 = vunpack.c.l.b16 %v631
        %v730 = vunpack.c.h.b16 %v631
        %v731 = vunpack.c.l.b16 %v632
        %v732 = vunpack.c.h.b16 %v632
        %v733 = vunpack.c.l.b16 %v633
        %v734 = vunpack.c.h.b16 %v633
        %v735 = vunpack.c.l.b16 %v634
        %v736 = vunpack.c.h.b16 %v634
        %v737 = vunpack.c.l.b16 %v635
        %v738 = vunpack.c.h.b16 %v635
        %v739 = vunpack.c.l.b16 %v636
        %v740 = vunpack.c.h.b16 %v636
        %v741 = vunpack.c.l.b16 %v637
        %v742 = vunpack.c.h.b16 %v637
        %v743 = vunpack.c.l.b16 %v638
        %v744 = vunpack.c.h.b16 %v638
        %v745 = vunpack.c.l.b16 %v639
        %v746 = vunpack.c.h.b16 %v639
        %v747 = vunpack.c.l.b16 %v640
        %v748 = vunpack.c.h.b16 %v640
        %v749 = vpack.c.b16 %v687, %v685
        %v750 = vpack.c.b16 %v688, %v686
        %v751 = vpack.c.b16 %v691, %v689
        %v752 = vpack.c.b16 %v692, %v690
        %v753 = vpack.c.b16 %v695, %v693
        %v754 = vpack.c.b16 %v696, %v694
        %v755 = vpack.c.b16 %v699, %v697
        %v756 = vpack.c.b16 %v700, %v698
        %v757 = vpack.c.b16 %v703, %v701
        %v758 = vpack.c.b16 %v704, %v702
        %v759 = vpack.c.b16 %v707, %v705
        %v760 = vpack.c.b16 %v708, %v706
        %v761 = vpack.c.b16 %v711, %v709
        %v762 = vpack.c.b16 %v712, %v710
        %v763 = vpack.c.b16 %v715, %v713
        %v764 = vpack.c.b16 %v716, %v714
        %v765 = vpack.c.b16 %v719, %v717
        %v766 = vpack.c.b16 %v720, %v718
        %v767 = vpack.c.b16 %v723, %v721
        %v768 = vpack.c.b16 %v724, %v722
        %v769 = vpack.c.b16 %v727, %v725
        %v770 = vpack.c.b16 %v728, %v726
        %v771 = vpack.c.b16 %v731, %v729
        %v772 = vpack.c.b16 %v732, %v730
        %v773 = vpack.c.b16 %v735, %v733
        %v774 = vpack.c.b16 %v736, %v734
        %v775 = vpack.c.b16 %v739, %v737
        %v776 = vpack.c.b16 %v740, %v738
        %v777 = vpack.c.b16 %v743, %v741
        %v778 = vpack.c.b16 %v744, %v742
        %v779 = vpack.c.b16 %v747, %v745
        %v780 = vpack.c.b16 %v748, %v746
        %813 = vmatprep.subr.bf16.mxu0 %v750
        %814 = vmatpush1.bf16.msra.mxu0 %v749
        %815 = vmatprep.subr.bf16.mxu0 %v752
        %816 = vmatpush1.bf16.msra.mxu0 %v751
        %817 = vmatprep.subr.bf16.mxu0 %v754
        %818 = vmatpush1.bf16.msra.mxu0 %v753
        %819 = vmatprep.subr.bf16.mxu0 %v756
        %820 = vmatpush1.bf16.msra.mxu0 %v755
        %821 = vmatprep.subr.bf16.mxu0 %v758
        %822 = vmatpush1.bf16.msra.mxu0 %v757
        %823 = vmatprep.subr.bf16.mxu0 %v760
        %824 = vmatpush1.bf16.msra.mxu0 %v759
        %825 = vmatprep.subr.bf16.mxu0 %v762
        %826 = vmatpush1.bf16.msra.mxu0 %v761
        %827 = vmatprep.subr.bf16.mxu0 %v764
        %828 = vmatpush1.bf16.msra.mxu0 %v763
        %829 = vmatprep.subr.bf16.mxu0 %v766
        %830 = vmatpush1.bf16.msra.mxu0 %v765
        %831 = vmatprep.subr.bf16.mxu0 %v768
        %832 = vmatpush1.bf16.msra.mxu0 %v767
        %833 = vmatprep.subr.bf16.mxu0 %v770
        %834 = vmatpush1.bf16.msra.mxu0 %v769
        %835 = vmatprep.subr.bf16.mxu0 %v772
        %836 = vmatpush1.bf16.msra.mxu0 %v771
        %837 = vmatprep.subr.bf16.mxu0 %v774
        %838 = vmatpush1.bf16.msra.mxu0 %v773
        %839 = vmatprep.subr.bf16.mxu0 %v776
        %840 = vmatpush1.bf16.msra.mxu0 %v775
        %841 = vmatprep.subr.bf16.mxu0 %v778
        %842 = vmatpush1.bf16.msra.mxu0 %v777
        %843 = vmatprep.subr.bf16.mxu0 %v780
        %844 = vmatpush1.bf16.msra.mxu0 %v779
        %845 = vmatprep.mubr.bf16.mxu0 %v594
        %846 = vmatmul.mubr.bf16.gmra.mrb[0].mxu0 %v593
        %v847 = vpop.f32.mrb[0].mxu0
        %v848 = vadd.f32 %v646, %v847
        %v849 = vpop.f32.mrb[0].mxu0
        %v850 = vadd.f32 %v650, %v849
        %v851 = vpop.f32.mrb[0].mxu0
        %v852 = vadd.f32 %v646, %v851
        %v853 = vpop.f32.mrb[0].mxu0
        %v854 = vadd.f32 %v650, %v853
        %855 = vmatprep.mubr.bf16.mxu0 %v596
        %856 = vmatmul.mubr.bf16.gmra.mrb[0].mxu0 %v595
        %v857 = vpop.f32.mrb[0].mxu0
        %v858 = vadd.f32 %v646, %v857
        %v859 = vpop.f32.mrb[0].mxu0
        %v860 = vadd.f32 %v650, %v859
        %v861 = vpop.f32.mrb[0].mxu0
        %v862 = vadd.f32 %v646, %v861
        %v863 = vpop.f32.mrb[0].mxu0
        %v864 = vadd.f32 %v650, %v863
        %865 = vmatprep.mubr.bf16.mxu0 %v598
        %866 = vmatmul.mubr.bf16.gmra.mrb[0].mxu0 %v597
        %v867 = vpop.f32.mrb[0].mxu0
        %v868 = vadd.f32 %v646, %v867
        %v869 = vpop.f32.mrb[0].mxu0
        %v870 = vadd.f32 %v650, %v869
        %v871 = vpop.f32.mrb[0].mxu0
        %v872 = vadd.f32 %v646, %v871
        %v873 = vpop.f32.mrb[0].mxu0
        %v874 = vadd.f32 %v650, %v873
        %875 = vmatprep.mubr.bf16.mxu0 %v600
        %876 = vmatmul.mubr.bf16.gmra.mrb[0].mxu0 %v599
        %v877 = vpop.f32.mrb[0].mxu0
        %v878 = vadd.f32 %v646, %v877
        %v879 = vpop.f32.mrb[0].mxu0
        %v880 = vadd.f32 %v650, %v879
        %v881 = vpop.f32.mrb[0].mxu0
        %v882 = vadd.f32 %v646, %v881
        %v883 = vpop.f32.mrb[0].mxu0
        %v884 = vadd.f32 %v650, %v883
        %885 = vmatprep.mubr.bf16.mxu0 %v602
        %886 = vmatmul.mubr.bf16.gmra.mrb[0].mxu0 %v601
        %v887 = vpop.f32.mrb[0].mxu0
        %v888 = vadd.f32 %v646, %v887
        %v889 = vpop.f32.mrb[0].mxu0
        %v890 = vadd.f32 %v650, %v889
        %v891 = vpop.f32.mrb[0].mxu0
        %v892 = vadd.f32 %v646, %v891
        %v893 = vpop.f32.mrb[0].mxu0
        %v894 = vadd.f32 %v650, %v893
        %895 = vmatprep.mubr.bf16.mxu0 %v604
        %896 = vmatmul.mubr.bf16.gmra.mrb[0].mxu0 %v603
        %v897 = vpop.f32.mrb[0].mxu0
        %v898 = vadd.f32 %v646, %v897
        %v899 = vpop.f32.mrb[0].mxu0
        %v900 = vadd.f32 %v650, %v899
        %v901 = vpop.f32.mrb[0].mxu0
        %v902 = vadd.f32 %v646, %v901
        %v903 = vpop.f32.mrb[0].mxu0
        %v904 = vadd.f32 %v650, %v903
        %905 = vmatprep.mubr.bf16.mxu0 %v606
        %906 = vmatmul.mubr.bf16.gmra.mrb[0].mxu0 %v605
        %v907 = vpop.f32.mrb[0].mxu0
        %v908 = vadd.f32 %v646, %v907
        %v909 = vpop.f32.mrb[0].mxu0
        %v910 = vadd.f32 %v650, %v909
        %v911 = vpop.f32.mrb[0].mxu0
        %v912 = vadd.f32 %v646, %v911
        %v913 = vpop.f32.mrb[0].mxu0
        %v914 = vadd.f32 %v650, %v913
        %915 = vmatprep.mubr.bf16.mxu0 %v608
        %916 = vmatmul.mubr.bf16.gmra.mrb[0].mxu0 %v607
        %v917 = vpop.f32.mrb[0].mxu0
        %v918 = vadd.f32 %v646, %v917
        %v919 = vpop.f32.mrb[0].mxu0
        %v920 = vadd.f32 %v650, %v919
        %v921 = vpop.f32.mrb[0].mxu0
        %v922 = vadd.f32 %v646, %v921
        %v923 = vpop.f32.mrb[0].mxu0
        %v924 = vadd.f32 %v650, %v923
        %925 = vdwg.mxu0
        %v926 = vmul.f32 %v850, 1.442695
        %v927 = vpow.pop %v926
        %v928 = vmul.f32 %v854, 1.442695
        %v929 = vpow.pop %v928
        %v930 = vmul.f32 %v860, 1.442695
        %v931 = vpow.pop %v930
        %v932 = vmul.f32 %v864, 1.442695
        %v933 = vpow.pop %v932
        %v934 = vmul.f32 %v870, 1.442695
        %v935 = vpow.pop %v934
        %v936 = vmul.f32 %v874, 1.442695
        %v937 = vpow.pop %v936
        %v938 = vmul.f32 %v880, 1.442695
        %v939 = vpow.pop %v938
        %v940 = vmul.f32 %v884, 1.442695
        %v941 = vpow.pop %v940
        %v942 = vmul.f32 %v890, 1.442695
        %v943 = vpow.pop %v942
        %v944 = vmul.f32 %v894, 1.442695
        %v945 = vpow.pop %v944
        %v946 = vmul.f32 %v900, 1.442695
        %v947 = vpow.pop %v946
        %v948 = vmul.f32 %v904, 1.442695
        %v949 = vpow.pop %v948
        %v950 = vmul.f32 %v910, 1.442695
        %v951 = vpow.pop %v950
        %v952 = vmul.f32 %v914, 1.442695
        %v953 = vpow.pop %v952
        %v954 = vmul.f32 %v920, 1.442695
        %v955 = vpow.pop %v954
        %v956 = vmul.f32 %v924, 1.442695
        %v957 = vpow.pop %v956
        %v958 = vmul.f32 %v316, %v927
        %v959 = vmul.f32 %v317, %v929
        %v960 = vmul.f32 %v318, %v931
        %v961 = vmul.f32 %v319, %v933
        %v962 = vmul.f32 %v320, %v935
        %v963 = vmul.f32 %v321, %v937
        %v964 = vmul.f32 %v322, %v939
        %v965 = vmul.f32 %v323, %v941
        %v966 = vmul.f32 %v324, %v943
        %v967 = vmul.f32 %v325, %v945
        %v968 = vmul.f32 %v326, %v947
        %v969 = vmul.f32 %v327, %v949
        %v970 = vmul.f32 %v328, %v951
        %v971 = vmul.f32 %v329, %v953
        %v972 = vmul.f32 %v330, %v955
        %v973 = vmul.f32 %v331, %v957
        %v974 = vadd.f32 %v958, %v848
        %v975 = vadd.f32 %v959, %v852
        %v976 = vadd.f32 %v960, %v858
        %v977 = vadd.f32 %v961, %v862
        %v978 = vadd.f32 %v962, %v868
        %v979 = vadd.f32 %v963, %v872
        %v980 = vadd.f32 %v964, %v878
        %v981 = vadd.f32 %v965, %v882
        %v982 = vadd.f32 %v966, %v888
        %v983 = vadd.f32 %v967, %v892
        %v984 = vadd.f32 %v968, %v898
        %v985 = vadd.f32 %v969, %v902
        %v986 = vadd.f32 %v970, %v908
        %v987 = vadd.f32 %v971, %v912
        %v988 = vadd.f32 %v972, %v918
        %v989 = vadd.f32 %v973, %v922
        %990 = vst [vmem:[%s299] sm:$0xff] %v974
        %991 = vst [vmem:[%s299 + $0x8] sm:$0xff] %v975
        %992 = vst [vmem:[%s299 + $0x10] sm:$0xff] %v976
        %993 = vst [vmem:[%s299 + $0x18] sm:$0xff] %v977
        %994 = vst [vmem:[%s299 + $0x20] sm:$0xff] %v978
        %995 = vst [vmem:[%s299 + $0x28] sm:$0xff] %v979
        %996 = vst [vmem:[%s299 + $0x30] sm:$0xff] %v980
        %997 = vst [vmem:[%s299 + $0x38] sm:$0xff] %v981
        %998 = vst [vmem:[%s299 + $0x40] sm:$0xff] %v982
        %999 = vst [vmem:[%s299 + $0x48] sm:$0xff] %v983
        %1000 = vst [vmem:[%s299 + $0x50] sm:$0xff] %v984
        %1001 = vst [vmem:[%s299 + $0x58] sm:$0xff] %v985
        %1002 = vst [vmem:[%s299 + $0x60] sm:$0xff] %v986
        %1003 = vst [vmem:[%s299 + $0x68] sm:$0xff] %v987
        %1004 = vst [vmem:[%s299 + $0x70] sm:$0xff] %v988
        %1005 = vst [vmem:[%s299 + $0x78] sm:$0xff] %v989
        %1006 = vadd.xlane.f32.xlu0 %v850
        %v1007 = vpop.xlane.xlu0 %1006
        %1008 = vadd.xlane.f32.xlu0 %v854
        %v1009 = vpop.xlane.xlu0 %1008
        %1010 = vadd.xlane.f32.xlu0 %v860
        %v1011 = vpop.xlane.xlu0 %1010
        %1012 = vadd.xlane.f32.xlu0 %v864
        %v1013 = vpop.xlane.xlu0 %1012
        %1014 = vadd.xlane.f32.xlu0 %v870
        %v1015 = vpop.xlane.xlu0 %1014
        %1016 = vadd.xlane.f32.xlu0 %v874
        %v1017 = vpop.xlane.xlu0 %1016
        %1018 = vadd.xlane.f32.xlu0 %v880
        %v1019 = vpop.xlane.xlu0 %1018
        %1020 = vadd.xlane.f32.xlu0 %v884
        %v1021 = vpop.xlane.xlu0 %1020
        %1022 = vadd.xlane.f32.xlu0 %v890
        %v1023 = vpop.xlane.xlu0 %1022
        %1024 = vadd.xlane.f32.xlu0 %v894
        %v1025 = vpop.xlane.xlu0 %1024
        %1026 = vadd.xlane.f32.xlu0 %v900
        %v1027 = vpop.xlane.xlu0 %1026
        %1028 = vadd.xlane.f32.xlu0 %v904
        %v1029 = vpop.xlane.xlu0 %1028
        %1030 = vadd.xlane.f32.xlu0 %v910
        %v1031 = vpop.xlane.xlu0 %1030
        %1032 = vadd.xlane.f32.xlu0 %v914
        %v1033 = vpop.xlane.xlu0 %1032
        %1034 = vadd.xlane.f32.xlu0 %v920
        %v1035 = vpop.xlane.xlu0 %1034
        %1036 = vadd.xlane.f32.xlu0 %v924
        %v1037 = vpop.xlane.xlu0 %1036
        %vm1038 = vcmask 7168
        %1039 = vst.msk [vmem:[%s313] sm:$0xff] %vm1038, %v1007
        %1040 = vst.msk [vmem:[%s313 + $0x8] sm:$0xff] %vm1038, %v1009
        %1041 = vst.msk [vmem:[%s313 + $0x10] sm:$0xff] %vm1038, %v1011
        %1042 = vst.msk [vmem:[%s313 + $0x18] sm:$0xff] %vm1038, %v1013
        %1043 = vst.msk [vmem:[%s313 + $0x20] sm:$0xff] %vm1038, %v1015
        %1044 = vst.msk [vmem:[%s313 + $0x28] sm:$0xff] %vm1038, %v1017
        %1045 = vst.msk [vmem:[%s313 + $0x30] sm:$0xff] %vm1038, %v1019
        %1046 = vst.msk [vmem:[%s313 + $0x38] sm:$0xff] %vm1038, %v1021
        %1047 = vst.msk [vmem:[%s313 + $0x40] sm:$0xff] %vm1038, %v1023
        %1048 = vst.msk [vmem:[%s313 + $0x48] sm:$0xff] %vm1038, %v1025
        %1049 = vst.msk [vmem:[%s313 + $0x50] sm:$0xff] %vm1038, %v1027
        %1050 = vst.msk [vmem:[%s313 + $0x58] sm:$0xff] %vm1038, %v1029
        %1051 = vst.msk [vmem:[%s313 + $0x60] sm:$0xff] %vm1038, %v1031
        %1052 = vst.msk [vmem:[%s313 + $0x68] sm:$0xff] %vm1038, %v1033
        %1053 = vst.msk [vmem:[%s313 + $0x70] sm:$0xff] %vm1038, %v1035
        %1054 = vst.msk [vmem:[%s313 + $0x78] sm:$0xff] %vm1038, %v1037
        %s1055 = sand.u32 %s143, 1
        %s1056 = scalar_lea.sflag [#allocation4], %s1055
        %s1057 = sand.u32 %s143, 1
        %s1058 = smul.addr %s1057, 128
        %s1059 = scalar_lea.vmem [#allocation8], %s1058
        %s1060 = smul.u32 16, %s25
        %p1061 = scmp.lt.s32.totalorder %s1060, 31
        %s1062 = scalar_select %p1061, %s1060, 31
        %s1063 = smul.addr %s1062, 8
        %s1064 = scalar_lea.vmem %s6, %s1063
        // Predicated region
        $region53: #{tpu_custom_call.1} parent=39 // pred_check
          %p1065 = pneg %p153
        $region54: #{tpu_custom_call.1} parent=39 // pred_check_branch
          %1067 = sbr.rel (%p1065) target = $region56
        $region55: #{tpu_custom_call.1} parent=39 // pred_region
          %s1068 = smul.u32 16, %s25
          %s1070 = ssub.s32 2048, 2048
          %1071 = vsyncadd %s1056, %s1070
          %s1072 = smul.addr %s1068, 128
          %s1073 = scalar_lea.hbm %s5, %s1072
          %s1074 = sshll.u32 %s1059, 4
          %s1075 = int_to_ptr.vmem [resolvable:$true] %s1074
          %1080 = dma.vmem_to_hbm [thread:$0]  %s1075, 2048, %s1073, %s1056, 128, 128, 8
        $region56: #{tpu_custom_call.1} parent=39 // pred_fallthru
          _
        // Predicated region
        $region57: #{tpu_custom_call.1} parent=39 // pred_check
          %p1081 = pneg %p179
        $region58: #{tpu_custom_call.1} parent=39 // pred_check_branch
          %1083 = sbr.rel (%p1081) target = $region60
        $region59: #{tpu_custom_call.1} parent=39 // pred_region
          %s1084 = smul.u32 16, %s25
        $region60: #{tpu_custom_call.1} parent=39 // pred_fallthru
          _
      $region40: #{tpu_custom_call.1} parent=5 // pred_fallthru
        _
      %p1085 = scmp.le.s32.totalorder 2, %s20
      // Predicated region
      $region61: #{tpu_custom_call.1} parent=5 // pred_check
        %p1086 = pneg %p1085
      $region62: #{tpu_custom_call.1} parent=5 // pred_check_branch
        %1088 = sbr.rel (%p1086) target = $region64
      $region63: #{tpu_custom_call.1} parent=5 // pred_region
        %s1089 = ssub.s32 %s20, 2
        // Predicated region
        $region65: #{tpu_custom_call.1} parent=63 // pred_check
          %p1090 = pneg %p159
        $region66: #{tpu_custom_call.1} parent=63 // pred_check_branch
          %1092 = sbr.rel (%p1090) target = $region68
        $region67: #{tpu_custom_call.1} parent=63 // pred_region
          %s1093 = sand.u32 %s144, 1
          %s1094 = scalar_lea.sflag [#allocation4], %s1093
          %s1095 = sand.u32 %s144, 1
          %s1096 = smul.addr %s1095, 128
          %s1097 = scalar_lea.vmem [#allocation8], %s1096
          %1098 = dma.done %s1094, 2048
        $region68: #{tpu_custom_call.1} parent=63 // pred_fallthru
          _
        // Predicated region
        $region69: #{tpu_custom_call.1} parent=63 // pred_check
          %p1099 = pneg %p185
        $region70: #{tpu_custom_call.1} parent=63 // pred_check_branch
          %1101 = sbr.rel (%p1099) target = $region72
        $region71: #{tpu_custom_call.1} parent=63 // pred_region
          %s1102 = smul.u32 16, %s26
          %p1103 = scmp.lt.s32.totalorder %s1102, 31
          %s1104 = scalar_select %p1103, %s1102, 31
          %s1105 = smul.addr %s1104, 8
          %s1106 = scalar_lea.vmem %s6, %s1105
        $region72: #{tpu_custom_call.1} parent=63 // pred_fallthru
          _
      $region64: #{tpu_custom_call.1} parent=5 // pred_fallthru
        _
    $region6: #{tpu_custom_call.1} parent=1 // loop_footer
      %s24 = sadd.s32 1, %s20
    $region7: #{tpu_custom_call.1} parent=1 // loop_footer_branch
      %19 = sbr.rel target = $region3
    $region8: #{tpu_custom_call.1} parent=1 // loop_exit
      _
    %1107 = vsyncpa [#allocation3], 1
    %s1108 = scalar_lea.sflag [#allocation3], 1
    %1109 = vsyncpa %s1108, 1
    %1110 = vsyncpa [#allocation6], 1
    %1111 = vsyncpa [#allocation4], 1
    %s1112 = scalar_lea.sflag [#allocation4], 1
    %1113 = vsyncpa %s1112, 1

</llo_original>
